<compile_context>
chip_gen: v5e
topology: v5e:2x2
jax: 0.10.0
libtpu: 0.0.40
codegen_flags: <defaults>
</compile_context>

<pallas_src>
import jax
import jax.numpy as jnp
from jax.experimental import pallas as pl
from jax.experimental.pallas import tpu as pltpu

_BIG = 3.0e38  # "masked out" sentinel for the running min (fits in f32)


def _round_up(a, b):
    return ((a + b - 1) // b) * b


def _make_kernel(n_real, n_pad, tm, tn, margin):
    pad_cols = n_pad != n_real

    def kernel(xr_ref, xc_ref, sqr_ref, sqc_ref, lr_ref, lc_ref,
               out_ref, hp_ref, hn_ref, rmax_ref):
        i = pl.program_id(0)
        j = pl.program_id(1)

        @pl.when(j == 0)
        def _init():
            hp_ref[...] = jnp.zeros_like(hp_ref)
            hn_ref[...] = jnp.full_like(hn_ref, _BIG)
            rmax_ref[...] = jnp.zeros_like(rmax_ref)

        xr = xr_ref[...]            # (TM, Dp) anchor rows
        xc = xc_ref[...]            # (TN, Dp) candidate rows
        sq_r = sqr_ref[...]         # (TM, 1)  ||x_i||^2
        sq_c = sqc_ref[...]         # (1, TN)  ||x_j||^2
        lbl_r = lr_ref[...]         # (TM, 1)  int32
        lbl_c = lc_ref[...]         # (1, TN)  int32

        # Gram block on the MXU; contract the last dim of both operands so no
        # explicit (D, TN) transpose is ever materialized.
        gram = jax.lax.dot_general(
            xr, xc, (((1,), (1,)), ((), ())),
            preferred_element_type=jnp.float32)           # (TM, TN)
        d2 = jnp.maximum(sq_r + sq_c - 2.0 * gram, 0.0)
        dist = jnp.sqrt(d2)                               # (TM, TN)

        labels_equal = lbl_r == lbl_c                     # (TM, TN)

        row_ids = i * tm + jax.lax.broadcasted_iota(jnp.int32, (tm, tn), 0)
        col_ids = j * tn + jax.lax.broadcasted_iota(jnp.int32, (tm, tn), 1)
        pos_mask = jnp.logical_and(labels_equal, row_ids != col_ids)
        neg_mask = jnp.logical_not(labels_equal)
        if pad_cols:
            col_valid = col_ids < n_real
            pos_mask = jnp.logical_and(pos_mask, col_valid)
            neg_mask = jnp.logical_and(neg_mask, col_valid)
            dist_all = jnp.where(col_valid, dist, 0.0)
        else:
            dist_all = dist

        # Streaming row reductions into the per-row-tile accumulators.
        hp_ref[...] = jnp.maximum(
            hp_ref[...],
            jnp.max(jnp.where(pos_mask, dist, 0.0), axis=1, keepdims=True))
        hn_ref[...] = jnp.minimum(
            hn_ref[...],
            jnp.min(jnp.where(neg_mask, dist, _BIG), axis=1, keepdims=True))
        # Row max over valid columns: with min(hn, rmax) at finalize this is
        # exactly the reference's "add row-max to non-negatives" behaviour,
        # including anchors that have no negatives at all.
        rmax_ref[...] = jnp.maximum(
            rmax_ref[...], jnp.max(dist_all, axis=1, keepdims=True))

        @pl.when(j == pl.num_programs(1) - 1)
        def _finalize():
            hardest_neg = jnp.minimum(hn_ref[...], rmax_ref[...])
            loss = jnp.maximum(hp_ref[...] - hardest_neg + margin, 0.0)
            out_ref[...] = loss

    return kernel


def batch_hard_triplet_loss(x, target, margin=1.0):
    """x: (N, D) float, target: (N,) int labels. Returns scalar f32 mean loss."""
    n, d = x.shape
    x = x.astype(jnp.float32)
    lbl = target.astype(jnp.int32)

    # Lane-align D and pick MXU-friendly square tiles; pad N to a tile multiple.
    d_pad = _round_up(d, 128)
    tile = min(256, _round_up(n, 128))
    tm = tn = tile
    n_pad = _round_up(n, tile)

    xp = jnp.pad(x, ((0, n_pad - n), (0, d_pad - d)))
    lblp = jnp.pad(lbl, (0, n_pad - n), constant_values=-1)

    sq = jnp.sum(xp * xp, axis=1)                 # (n_pad,)
    sq_row = sq.reshape(n_pad, 1)
    sq_col = sq.reshape(1, n_pad)
    lbl_row = lblp.reshape(n_pad, 1)
    lbl_col = lblp.reshape(1, n_pad)

    grid = (n_pad // tm, n_pad // tn)
    kernel = _make_kernel(n, n_pad, tm, tn, float(margin))

    # VMEM budget: double-buffered x tiles + (TM, TN) working set, with headroom.
    vmem_limit = int(min(
        64 * 1024 * 1024,
        max(16 * 1024 * 1024, 4 * (4 * (tm + tn) * d_pad + 12 * tm * tn))))

    per_row = pl.pallas_call(
        kernel,
        out_shape=jax.ShapeDtypeStruct((n_pad, 1), jnp.float32),
        grid_spec=pltpu.PrefetchScalarGridSpec(
            num_scalar_prefetch=0,
            grid=grid,
            in_specs=[
                pl.BlockSpec((tm, d_pad), lambda i, j: (i, 0)),  # anchor rows
                pl.BlockSpec((tn, d_pad), lambda i, j: (j, 0)),  # candidate rows
                pl.BlockSpec((tm, 1), lambda i, j: (i, 0)),      # row sq norms
                pl.BlockSpec((1, tn), lambda i, j: (0, j)),      # col sq norms
                pl.BlockSpec((tm, 1), lambda i, j: (i, 0)),      # row labels
                pl.BlockSpec((1, tn), lambda i, j: (0, j)),      # col labels
            ],
            out_specs=pl.BlockSpec((tm, 1), lambda i, j: (i, 0)),
            scratch_shapes=[
                pltpu.VMEM((tm, 1), jnp.float32),  # hardest positive (running max)
                pltpu.VMEM((tm, 1), jnp.float32),  # hardest negative (running min)
                pltpu.VMEM((tm, 1), jnp.float32),  # row max (no-negative fallback)
            ],
        ),
        compiler_params=pltpu.CompilerParams(
            dimension_semantics=("parallel", "arbitrary"),
            vmem_limit_bytes=vmem_limit,
        ),
    )(xp, xp, sq_row, sq_col, lbl_row, lbl_col)

    return jnp.mean(per_row[:n, 0])


def _reference_loss(x, target, margin=1.0):
    # Pure-JAX mirror of the PyTorch forward, for sanity checking.
    d2 = jnp.sum((x[:, None, :] - x[None, :, :]) ** 2, axis=-1)
    dist = jnp.sqrt(jnp.maximum(d2, 0.0))
    eq = target[None, :] == target[:, None]
    n = x.shape[0]
    pos_mask = eq & (~jnp.eye(n, dtype=bool))
    neg_mask = ~eq
    hp = jnp.max(pos_mask.astype(jnp.float32) * dist, axis=1, keepdims=True)
    row_max = jnp.max(dist, axis=1, keepdims=True)
    hn = jnp.min(dist + row_max * (1.0 - neg_mask.astype(jnp.float32)),
                 axis=1, keepdims=True)
    return jnp.mean(jnp.maximum(hp - hn + margin, 0.0))


if __name__ == "__main__":
    key = jax.random.PRNGKey(0)
    k1, k2, k3, k4 = jax.random.split(key, 4)

    # Small case (module's test scale): single tile.
    N, D = 8, 32
    x = jax.random.normal(k1, (N, D), dtype=jnp.float32)
    target = jax.random.randint(k2, (N,), 0, 3, dtype=jnp.int32)
    loss = batch_hard_triplet_loss(x, target, margin=1.0)
    jax.block_until_ready(loss)
    ref = _reference_loss(x, target, margin=1.0)
    assert jnp.allclose(loss, ref, atol=1e-4, rtol=1e-4), (loss, ref)

    # Larger, non-aligned case: exercises multi-tile streaming + padding masks.
    N2, D2 = 300, 72
    x2 = jax.random.normal(k3, (N2, D2), dtype=jnp.float32)
    target2 = jax.random.randint(k4, (N2,), 0, 5, dtype=jnp.int32)
    loss2 = batch_hard_triplet_loss(x2, target2, margin=1.0)
    jax.block_until_ready(loss2)
    ref2 = _reference_loss(x2, target2, margin=1.0)
    assert jnp.allclose(loss2, ref2, atol=1e-4, rtol=1e-4), (loss2, ref2)

    print("KERNEL_OK")
</pallas_src>

<mosaic_0001>
module attributes {stable_mosaic.version = 11 : i64} {
  func.func @kernel(%arg0: i32, %arg1: i32, %arg2: memref<128x128xf32, #tpu.memory_space<vmem>>, %arg3: memref<128x128xf32, #tpu.memory_space<vmem>>, %arg4: memref<128x1xf32, #tpu.memory_space<vmem>>, %arg5: memref<1x128xf32, #tpu.memory_space<vmem>>, %arg6: memref<128x1xi32, #tpu.memory_space<vmem>>, %arg7: memref<1x128xi32, #tpu.memory_space<vmem>>, %arg8: memref<128x1xf32, #tpu.memory_space<vmem>>, %arg9: memref<128x1xf32, #tpu.memory_space<vmem>>, %arg10: memref<128x1xf32, #tpu.memory_space<vmem>>, %arg11: memref<128x1xf32, #tpu.memory_space<vmem>>) attributes {dimension_semantics = [#tpu.dimension_semantics<parallel>, #tpu.dimension_semantics<arbitrary>], iteration_bounds = array<i64: 1, 1>, scalar_prefetch = 0 : i64, scratch_operands = 3 : i64, tpu.core_type = #tpu.core_type<tc>, window_params = [{transform_indices = @transform_0, window_bounds = array<i64: 128, 128>}, {transform_indices = @transform_1, window_bounds = array<i64: 128, 128>}, {transform_indices = @transform_2, window_bounds = array<i64: 128, 1>}, {transform_indices = @transform_3, window_bounds = array<i64: 1, 128>}, {transform_indices = @transform_4, window_bounds = array<i64: 128, 1>}, {transform_indices = @transform_5, window_bounds = array<i64: 1, 128>}, {transform_indices = @transform_6, window_bounds = array<i64: 128, 1>}]} {
    %c0_i32 = arith.constant 0 : i32
    %0 = arith.cmpi eq, %arg1, %c0_i32 : i32
    %1 = arith.extui %0 : i1 to i32
    %c0_i32_0 = arith.constant 0 : i32
    %2 = arith.cmpi ne, %1, %c0_i32_0 : i32
    scf.if %2 {
      %cst_36 = arith.constant 0.000000e+00 : f32
      %61 = vector.broadcast %cst_36 : f32 to vector<128x1xf32>
      %c0_37 = arith.constant 0 : index
      %c0_38 = arith.constant 0 : index
      %62 = vector.load %arg9[%c0_37, %c0_38] : memref<128x1xf32, #tpu.memory_space<vmem>>, vector<128x1xf32>
      tpu.vector_store %arg9[%c0_37, %c0_38], %61 {strides = array<i32>} : memref<128x1xf32, #tpu.memory_space<vmem>>, vector<128x1xf32>,
      %cst_39 = arith.constant 3.000000e+38 : f32
      %63 = vector.broadcast %cst_39 : f32 to vector<128x1xf32>
      %c0_40 = arith.constant 0 : index
      %c0_41 = arith.constant 0 : index
      %64 = vector.load %arg10[%c0_40, %c0_41] : memref<128x1xf32, #tpu.memory_space<vmem>>, vector<128x1xf32>
      tpu.vector_store %arg10[%c0_40, %c0_41], %63 {strides = array<i32>} : memref<128x1xf32, #tpu.memory_space<vmem>>, vector<128x1xf32>,
      %cst_42 = arith.constant 0.000000e+00 : f32
      %65 = vector.broadcast %cst_42 : f32 to vector<128x1xf32>
      %c0_43 = arith.constant 0 : index
      %c0_44 = arith.constant 0 : index
      %66 = vector.load %arg11[%c0_43, %c0_44] : memref<128x1xf32, #tpu.memory_space<vmem>>, vector<128x1xf32>
      tpu.vector_store %arg11[%c0_43, %c0_44], %65 {strides = array<i32>} : memref<128x1xf32, #tpu.memory_space<vmem>>, vector<128x1xf32>,
    } else {
    }
    %c0 = arith.constant 0 : index
    %c0_1 = arith.constant 0 : index
    %3 = vector.load %arg2[%c0, %c0_1] : memref<128x128xf32, #tpu.memory_space<vmem>>, vector<128x128xf32>
    %c0_2 = arith.constant 0 : index
    %c0_3 = arith.constant 0 : index
    %4 = vector.load %arg3[%c0_2, %c0_3] : memref<128x128xf32, #tpu.memory_space<vmem>>, vector<128x128xf32>
    %c0_4 = arith.constant 0 : index
    %c0_5 = arith.constant 0 : index
    %5 = vector.load %arg4[%c0_4, %c0_5] : memref<128x1xf32, #tpu.memory_space<vmem>>, vector<128x1xf32>
    %c0_6 = arith.constant 0 : index
    %c0_7 = arith.constant 0 : index
    %6 = vector.load %arg5[%c0_6, %c0_7] : memref<1x128xf32, #tpu.memory_space<vmem>>, vector<1x128xf32>
    %c0_8 = arith.constant 0 : index
    %c0_9 = arith.constant 0 : index
    %7 = vector.load %arg6[%c0_8, %c0_9] : memref<128x1xi32, #tpu.memory_space<vmem>>, vector<128x1xi32>
    %c0_10 = arith.constant 0 : index
    %c0_11 = arith.constant 0 : index
    %8 = vector.load %arg7[%c0_10, %c0_11] : memref<1x128xi32, #tpu.memory_space<vmem>>, vector<1x128xi32>
    %cst = arith.constant dense<0.000000e+00> : vector<128x128xf32>
    %9 = tpu.matmul %3, %4, %cst {dimension_numbers = #tpu.dot_dimension_numbers<[1], [1], [0], [0], [0, 0, 1, 0], [], []>} : vector<128x128xf32>, vector<128x128xf32>, vector<128x128xf32> -> vector<128x128xf32>
    %10 = vector.broadcast %5 : vector<128x1xf32> to vector<128x128xf32>
    %11 = vector.broadcast %6 : vector<1x128xf32> to vector<128x128xf32>
    %12 = arith.addf %10, %11 : vector<128x128xf32>
    %cst_12 = arith.constant 2.000000e+00 : f32
    %13 = vector.broadcast %cst_12 : f32 to vector<128x128xf32>
    %14 = arith.mulf %13, %9 : vector<128x128xf32>
    %15 = arith.subf %12, %14 : vector<128x128xf32>
    %cst_13 = arith.constant 0.000000e+00 : f32
    %16 = vector.broadcast %cst_13 : f32 to vector<128x128xf32>
    %17 = arith.maximumf %15, %16 : vector<128x128xf32>
    %18 = math.sqrt %17 : vector<128x128xf32>
    %19 = vector.broadcast %7 : vector<128x1xi32> to vector<128x128xi32>
    %20 = vector.broadcast %8 : vector<1x128xi32> to vector<128x128xi32>
    %21 = arith.cmpi eq, %19, %20 : vector<128x128xi32>
    %c128_i32 = arith.constant 128 : i32
    %22 = arith.muli %arg0, %c128_i32 : i32
    %23 = tpu.iota {dimensions = array<i32: 0>} : vector<128x128xi32>
    %24 = vector.broadcast %22 : i32 to vector<128x128xi32>
    %25 = arith.addi %24, %23 : vector<128x128xi32>
    %c128_i32_14 = arith.constant 128 : i32
    %26 = arith.muli %arg1, %c128_i32_14 : i32
    %27 = tpu.iota {dimensions = array<i32: 1>} : vector<128x128xi32>
    %28 = vector.broadcast %26 : i32 to vector<128x128xi32>
    %29 = arith.addi %28, %27 : vector<128x128xi32>
    %30 = arith.cmpi ne, %25, %29 : vector<128x128xi32>
    %31 = arith.andi %21, %30 : vector<128x128xi1>
    %cst_15 = arith.constant dense<true> : vector<128x128xi1>
    %32 = arith.xori %21, %cst_15 : vector<128x128xi1>
    %c8_i32 = arith.constant 8 : i32
    %33 = vector.broadcast %c8_i32 : i32 to vector<128x128xi32>
    %34 = arith.cmpi slt, %29, %33 : vector<128x128xi32>
    %35 = arith.andi %31, %34 : vector<128x128xi1>
    %36 = arith.andi %32, %34 : vector<128x128xi1>
    %cst_16 = arith.constant 0.000000e+00 : f32
    %37 = vector.broadcast %cst_16 : f32 to vector<128x128xf32>
    %38 = arith.select %34, %18, %37 : vector<128x128xi1>, vector<128x128xf32>
    %c0_17 = arith.constant 0 : index
    %c0_18 = arith.constant 0 : index
    %39 = vector.load %arg9[%c0_17, %c0_18] : memref<128x1xf32, #tpu.memory_space<vmem>>, vector<128x1xf32>
    %cst_19 = arith.constant 0.000000e+00 : f32
    %40 = vector.broadcast %cst_19 : f32 to vector<128x128xf32>
    %41 = arith.select %35, %18, %40 : vector<128x128xi1>, vector<128x128xf32>
    %cst_20 = arith.constant dense<0xFF800000> : vector<128xf32>
    %42 = vector.multi_reduction <maximumf>, %41, %cst_20 [1] : vector<128x128xf32> to vector<128xf32>
    %43 = vector.shape_cast %42 : vector<128xf32> to vector<128x1xf32>
    %44 = arith.maximumf %39, %43 : vector<128x1xf32>
    %c0_21 = arith.constant 0 : index
    %c0_22 = arith.constant 0 : index
    %45 = vector.load %arg9[%c0_21, %c0_22] : memref<128x1xf32, #tpu.memory_space<vmem>>, vector<128x1xf32>
    tpu.vector_store %arg9[%c0_21, %c0_22], %44 {strides = array<i32>} : memref<128x1xf32, #tpu.memory_space<vmem>>, vector<128x1xf32>,
    %c0_23 = arith.constant 0 : index
    %c0_24 = arith.constant 0 : index
    %46 = vector.load %arg10[%c0_23, %c0_24] : memref<128x1xf32, #tpu.memory_space<vmem>>, vector<128x1xf32>
    %cst_25 = arith.constant 3.000000e+38 : f32
    %47 = vector.broadcast %cst_25 : f32 to vector<128x128xf32>
    %48 = arith.select %36, %18, %47 : vector<128x128xi1>, vector<128x128xf32>
    %cst_26 = arith.constant dense<0x7F800000> : vector<128xf32>
    %49 = vector.multi_reduction <minimumf>, %48, %cst_26 [1] : vector<128x128xf32> to vector<128xf32>
    %50 = vector.shape_cast %49 : vector<128xf32> to vector<128x1xf32>
    %51 = arith.minimumf %46, %50 : vector<128x1xf32>
    %c0_27 = arith.constant 0 : index
    %c0_28 = arith.constant 0 : index
    %52 = vector.load %arg10[%c0_27, %c0_28] : memref<128x1xf32, #tpu.memory_space<vmem>>, vector<128x1xf32>
    tpu.vector_store %arg10[%c0_27, %c0_28], %51 {strides = array<i32>} : memref<128x1xf32, #tpu.memory_space<vmem>>, vector<128x1xf32>,
    %c0_29 = arith.constant 0 : index
    %c0_30 = arith.constant 0 : index
    %53 = vector.load %arg11[%c0_29, %c0_30] : memref<128x1xf32, #tpu.memory_space<vmem>>, vector<128x1xf32>
    %cst_31 = arith.constant dense<0xFF800000> : vector<128xf32>
    %54 = vector.multi_reduction <maximumf>, %38, %cst_31 [1] : vector<128x128xf32> to vector<128xf32>
    %55 = vector.shape_cast %54 : vector<128xf32> to vector<128x1xf32>
    %56 = arith.maximumf %53, %55 : vector<128x1xf32>
    %c0_32 = arith.constant 0 : index
    %c0_33 = arith.constant 0 : index
    %57 = vector.load %arg11[%c0_32, %c0_33] : memref<128x1xf32, #tpu.memory_space<vmem>>, vector<128x1xf32>
    tpu.vector_store %arg11[%c0_32, %c0_33], %56 {strides = array<i32>} : memref<128x1xf32, #tpu.memory_space<vmem>>, vector<128x1xf32>,
    %c0_i32_34 = arith.constant 0 : i32
    %58 = arith.cmpi eq, %arg1, %c0_i32_34 : i32
    %59 = arith.extui %58 : i1 to i32
    %c0_i32_35 = arith.constant 0 : i32
    %60 = arith.cmpi ne, %59, %c0_i32_35 : i32
    scf.if %60 {
      %c0_36 = arith.constant 0 : index
      %c0_37 = arith.constant 0 : index
      %61 = vector.load %arg10[%c0_36, %c0_37] : memref<128x1xf32, #tpu.memory_space<vmem>>, vector<128x1xf32>
      %c0_38 = arith.constant 0 : index
      %c0_39 = arith.constant 0 : index
      %62 = vector.load %arg11[%c0_38, %c0_39] : memref<128x1xf32, #tpu.memory_space<vmem>>, vector<128x1xf32>
      %63 = arith.minimumf %61, %62 : vector<128x1xf32>
      %c0_40 = arith.constant 0 : index
      %c0_41 = arith.constant 0 : index
      %64 = vector.load %arg9[%c0_40, %c0_41] : memref<128x1xf32, #tpu.memory_space<vmem>>, vector<128x1xf32>
      %65 = arith.subf %64, %63 : vector<128x1xf32>
      %cst_42 = arith.constant 1.000000e+00 : f32
      %66 = vector.broadcast %cst_42 : f32 to vector<128x1xf32>
      %67 = arith.addf %65, %66 : vector<128x1xf32>
      %cst_43 = arith.constant 0.000000e+00 : f32
      %68 = vector.broadcast %cst_43 : f32 to vector<128x1xf32>
      %69 = arith.maximumf %67, %68 : vector<128x1xf32>
      %c0_44 = arith.constant 0 : index
      %c0_45 = arith.constant 0 : index
      %70 = vector.load %arg8[%c0_44, %c0_45] : memref<128x1xf32, #tpu.memory_space<vmem>>, vector<128x1xf32>
      tpu.vector_store %arg8[%c0_44, %c0_45], %69 {strides = array<i32>} : memref<128x1xf32, #tpu.memory_space<vmem>>, vector<128x1xf32>,
    } else {
    }
    return
  }
  func.func @transform_0(%arg0: i32, %arg1: i32) -> (i32, i32) {
    %c0_i32 = arith.constant 0 : i32
    %c0_i32_0 = arith.constant 0 : i32
    return %arg0, %c0_i32 : i32, i32
  }
  func.func @transform_1(%arg0: i32, %arg1: i32) -> (i32, i32) {
    %c0_i32 = arith.constant 0 : i32
    %c0_i32_0 = arith.constant 0 : i32
    return %arg1, %c0_i32 : i32, i32
  }
  func.func @transform_2(%arg0: i32, %arg1: i32) -> (i32, i32) {
    %c0_i32 = arith.constant 0 : i32
    %c0_i32_0 = arith.constant 0 : i32
    return %arg0, %c0_i32 : i32, i32
  }
  func.func @transform_3(%arg0: i32, %arg1: i32) -> (i32, i32) {
    %c0_i32 = arith.constant 0 : i32
    %c0_i32_0 = arith.constant 0 : i32
    return %c0_i32, %arg1 : i32, i32
  }
  func.func @transform_4(%arg0: i32, %arg1: i32) -> (i32, i32) {
    %c0_i32 = arith.constant 0 : i32
    %c0_i32_0 = arith.constant 0 : i32
    return %arg0, %c0_i32 : i32, i32
  }
  func.func @transform_5(%arg0: i32, %arg1: i32) -> (i32, i32) {
    %c0_i32 = arith.constant 0 : i32
    %c0_i32_0 = arith.constant 0 : i32
    return %c0_i32, %arg1 : i32, i32
  }
  func.func @transform_6(%arg0: i32, %arg1: i32) -> (i32, i32) {
    %c0_i32 = arith.constant 0 : i32
    %c0_i32_0 = arith.constant 0 : i32
    return %arg0, %c0_i32 : i32, i32
  }
}

</mosaic_0001>

<llo_original>
// kernel: tpu_custom_call.1
$region0: #{tpu_custom_call.1}
  #allocation0 [shape = 'u32[]', space=smem, size = 0x4, offset = 0x4, fixed_abs, tag = 'smem constant byte address 0x4 - core index']
  #allocation1 [shape = 'u32[72,128]{1,0:T(1,128)}', space=vmem, size = 0x9000, scoped, tag = 'internal scratch']
  #allocation2 [shape = 'f32[128,1]{1,0:T(8,128)}', space=vmem, size = 0x10000, scoped, tag = 'scratch operand']
  #allocation3 [shape = 'f32[128,1]{1,0:T(8,128)}', space=vmem, size = 0x10000, scoped, tag = 'scratch operand']
  #allocation4 [shape = 'f32[128,1]{1,0:T(8,128)}', space=vmem, size = 0x10000, scoped, tag = 'scratch operand']
  %s0 = inlined_call_operand.vmem [shape: f32[128,128], index: 0, kind: input, shape index: {}]
  %s1 = inlined_call_operand.vmem [shape: f32[128,128], index: 1, kind: input, shape index: {}]
  %s2 = inlined_call_operand.vmem [shape: f32[128,1], index: 2, kind: input, shape index: {}]
  %s3 = inlined_call_operand.vmem [shape: f32[1,128], index: 3, kind: input, shape index: {}]
  %s4 = inlined_call_operand.vmem [shape: s32[128,1], index: 4, kind: input, shape index: {}]
  %s5 = inlined_call_operand.vmem [shape: s32[1,128], index: 5, kind: input, shape index: {}]
  %s6 = inlined_call_operand.vmem [shape: f32[128,1], index: 6, kind: output, shape index: {}]
  %s7 = sld [smem:[#allocation0]]
  $region42: #{tpu_custom_call.1} parent=0
    _
  %s9 = ssub.s32 1, %s7
  %s10 = scalar_select 0, %s9, %s7
  // Predicated region
  $region2: #{tpu_custom_call.1} parent=0 // pred_check
    _
  $region3: #{tpu_custom_call.1} parent=0 // pred_check_branch
    %12 = sbr.rel (0) target = $region5
  $region4: #{tpu_custom_call.1} parent=0 // pred_region
    _
  $region5: #{tpu_custom_call.1} parent=0 // pred_fallthru
    _
  // Predicated region
  $region6: #{tpu_custom_call.1} parent=0 // pred_check
    _
  $region7: #{tpu_custom_call.1} parent=0 // pred_check_branch
    %14 = sbr.rel (0) target = $region9
  $region8: #{tpu_custom_call.1} parent=0 // pred_region
    _
  $region9: #{tpu_custom_call.1} parent=0 // pred_fallthru
    _
  // Predicated region
  $region10: #{tpu_custom_call.1} parent=0 // pred_check
    _
  $region11: #{tpu_custom_call.1} parent=0 // pred_check_branch
    %16 = sbr.rel (0) target = $region13
  $region12: #{tpu_custom_call.1} parent=0 // pred_region
    _
  $region13: #{tpu_custom_call.1} parent=0 // pred_fallthru
    _
  // Predicated region
  $region14: #{tpu_custom_call.1} parent=0 // pred_check
    _
  $region15: #{tpu_custom_call.1} parent=0 // pred_check_branch
    %18 = sbr.rel (0) target = $region17
  $region16: #{tpu_custom_call.1} parent=0 // pred_region
    _
  $region17: #{tpu_custom_call.1} parent=0 // pred_fallthru
    _
  // Predicated region
  $region18: #{tpu_custom_call.1} parent=0 // pred_check
    _
  $region19: #{tpu_custom_call.1} parent=0 // pred_check_branch
    %20 = sbr.rel (0) target = $region21
  $region20: #{tpu_custom_call.1} parent=0 // pred_region
    _
  $region21: #{tpu_custom_call.1} parent=0 // pred_fallthru
    _
  // Predicated region
  $region22: #{tpu_custom_call.1} parent=0 // pred_check
    _
  $region23: #{tpu_custom_call.1} parent=0 // pred_check_branch
    %22 = sbr.rel (0) target = $region25
  $region24: #{tpu_custom_call.1} parent=0 // pred_region
    _
  $region25: #{tpu_custom_call.1} parent=0 // pred_fallthru
    _
  %p23 = scmp.eq.s32.totalorder 0, 0
  // Predicated region
  $region26: #{tpu_custom_call.1} parent=0 // pred_check
    %p24 = pneg %p23
  $region27: #{tpu_custom_call.1} parent=0 // pred_check_branch
    %26 = sbr.rel (%p24) target = $region29
  $region28: #{tpu_custom_call.1} parent=0 // pred_region
    %vm27 = vcmask 7168
    %28 = vst.msk [vmem:[#allocation2] sm:$0xff] %vm27, 0.0
    %29 = vst.msk [vmem:[#allocation2 + $0x8] sm:$0xff] %vm27, 0.0
    %30 = vst.msk [vmem:[#allocation2 + $0x10] sm:$0xff] %vm27, 0.0
    %31 = vst.msk [vmem:[#allocation2 + $0x18] sm:$0xff] %vm27, 0.0
    %32 = vst.msk [vmem:[#allocation2 + $0x20] sm:$0xff] %vm27, 0.0
    %33 = vst.msk [vmem:[#allocation2 + $0x28] sm:$0xff] %vm27, 0.0
    %34 = vst.msk [vmem:[#allocation2 + $0x30] sm:$0xff] %vm27, 0.0
    %35 = vst.msk [vmem:[#allocation2 + $0x38] sm:$0xff] %vm27, 0.0
    %36 = vst.msk [vmem:[#allocation2 + $0x40] sm:$0xff] %vm27, 0.0
    %37 = vst.msk [vmem:[#allocation2 + $0x48] sm:$0xff] %vm27, 0.0
    %38 = vst.msk [vmem:[#allocation2 + $0x50] sm:$0xff] %vm27, 0.0
    %39 = vst.msk [vmem:[#allocation2 + $0x58] sm:$0xff] %vm27, 0.0
    %40 = vst.msk [vmem:[#allocation2 + $0x60] sm:$0xff] %vm27, 0.0
    %41 = vst.msk [vmem:[#allocation2 + $0x68] sm:$0xff] %vm27, 0.0
    %42 = vst.msk [vmem:[#allocation2 + $0x70] sm:$0xff] %vm27, 0.0
    %43 = vst.msk [vmem:[#allocation2 + $0x78] sm:$0xff] %vm27, 0.0
    %44 = vst.msk [vmem:[#allocation3] sm:$0xff] %vm27, 3e+38
    %45 = vst.msk [vmem:[#allocation3 + $0x8] sm:$0xff] %vm27, 3e+38
    %46 = vst.msk [vmem:[#allocation3 + $0x10] sm:$0xff] %vm27, 3e+38
    %47 = vst.msk [vmem:[#allocation3 + $0x18] sm:$0xff] %vm27, 3e+38
    %48 = vst.msk [vmem:[#allocation3 + $0x20] sm:$0xff] %vm27, 3e+38
    %49 = vst.msk [vmem:[#allocation3 + $0x28] sm:$0xff] %vm27, 3e+38
    %50 = vst.msk [vmem:[#allocation3 + $0x30] sm:$0xff] %vm27, 3e+38
    %51 = vst.msk [vmem:[#allocation3 + $0x38] sm:$0xff] %vm27, 3e+38
    %52 = vst.msk [vmem:[#allocation3 + $0x40] sm:$0xff] %vm27, 3e+38
    %53 = vst.msk [vmem:[#allocation3 + $0x48] sm:$0xff] %vm27, 3e+38
    %54 = vst.msk [vmem:[#allocation3 + $0x50] sm:$0xff] %vm27, 3e+38
    %55 = vst.msk [vmem:[#allocation3 + $0x58] sm:$0xff] %vm27, 3e+38
    %56 = vst.msk [vmem:[#allocation3 + $0x60] sm:$0xff] %vm27, 3e+38
    %57 = vst.msk [vmem:[#allocation3 + $0x68] sm:$0xff] %vm27, 3e+38
    %58 = vst.msk [vmem:[#allocation3 + $0x70] sm:$0xff] %vm27, 3e+38
    %59 = vst.msk [vmem:[#allocation3 + $0x78] sm:$0xff] %vm27, 3e+38
    %60 = vst.msk [vmem:[#allocation4] sm:$0xff] %vm27, 0.0
    %61 = vst.msk [vmem:[#allocation4 + $0x8] sm:$0xff] %vm27, 0.0
    %62 = vst.msk [vmem:[#allocation4 + $0x10] sm:$0xff] %vm27, 0.0
    %63 = vst.msk [vmem:[#allocation4 + $0x18] sm:$0xff] %vm27, 0.0
    %64 = vst.msk [vmem:[#allocation4 + $0x20] sm:$0xff] %vm27, 0.0
    %65 = vst.msk [vmem:[#allocation4 + $0x28] sm:$0xff] %vm27, 0.0
    %66 = vst.msk [vmem:[#allocation4 + $0x30] sm:$0xff] %vm27, 0.0
    %67 = vst.msk [vmem:[#allocation4 + $0x38] sm:$0xff] %vm27, 0.0
    %68 = vst.msk [vmem:[#allocation4 + $0x40] sm:$0xff] %vm27, 0.0
    %69 = vst.msk [vmem:[#allocation4 + $0x48] sm:$0xff] %vm27, 0.0
    %70 = vst.msk [vmem:[#allocation4 + $0x50] sm:$0xff] %vm27, 0.0
    %71 = vst.msk [vmem:[#allocation4 + $0x58] sm:$0xff] %vm27, 0.0
    %72 = vst.msk [vmem:[#allocation4 + $0x60] sm:$0xff] %vm27, 0.0
    %73 = vst.msk [vmem:[#allocation4 + $0x68] sm:$0xff] %vm27, 0.0
    %74 = vst.msk [vmem:[#allocation4 + $0x70] sm:$0xff] %vm27, 0.0
    %75 = vst.msk [vmem:[#allocation4 + $0x78] sm:$0xff] %vm27, 0.0
  $region29: #{tpu_custom_call.1} parent=0 // pred_fallthru
    _
  %v76 = vld [vmem:[%s0] sm:$0xff]
  %v77 = vld [vmem:[%s0 + $0x8] sm:$0xff]
  %v78 = vld [vmem:[%s0 + $0x10] sm:$0xff]
  %v79 = vld [vmem:[%s0 + $0x18] sm:$0xff]
  %v80 = vld [vmem:[%s0 + $0x20] sm:$0xff]
  %v81 = vld [vmem:[%s0 + $0x28] sm:$0xff]
  %v82 = vld [vmem:[%s0 + $0x30] sm:$0xff]
  %v83 = vld [vmem:[%s0 + $0x38] sm:$0xff]
  %v84 = vld [vmem:[%s0 + $0x40] sm:$0xff]
  %v85 = vld [vmem:[%s0 + $0x48] sm:$0xff]
  %v86 = vld [vmem:[%s0 + $0x50] sm:$0xff]
  %v87 = vld [vmem:[%s0 + $0x58] sm:$0xff]
  %v88 = vld [vmem:[%s0 + $0x60] sm:$0xff]
  %v89 = vld [vmem:[%s0 + $0x68] sm:$0xff]
  %v90 = vld [vmem:[%s0 + $0x70] sm:$0xff]
  %v91 = vld [vmem:[%s0 + $0x78] sm:$0xff]
  %v92 = vld [vmem:[%s1] sm:$0xff]
  %v93 = vld [vmem:[%s1 + $0x8] sm:$0xff]
  %v94 = vld [vmem:[%s1 + $0x10] sm:$0xff]
  %v95 = vld [vmem:[%s1 + $0x18] sm:$0xff]
  %v96 = vld [vmem:[%s1 + $0x20] sm:$0xff]
  %v97 = vld [vmem:[%s1 + $0x28] sm:$0xff]
  %v98 = vld [vmem:[%s1 + $0x30] sm:$0xff]
  %v99 = vld [vmem:[%s1 + $0x38] sm:$0xff]
  %v100 = vld [vmem:[%s1 + $0x40] sm:$0xff]
  %v101 = vld [vmem:[%s1 + $0x48] sm:$0xff]
  %v102 = vld [vmem:[%s1 + $0x50] sm:$0xff]
  %v103 = vld [vmem:[%s1 + $0x58] sm:$0xff]
  %v104 = vld [vmem:[%s1 + $0x60] sm:$0xff]
  %v105 = vld [vmem:[%s1 + $0x68] sm:$0xff]
  %v106 = vld [vmem:[%s1 + $0x70] sm:$0xff]
  %v107 = vld [vmem:[%s1 + $0x78] sm:$0xff]
  %v108 = vld [vmem:[%s2] sm:$0xff]
  %v109 = vld [vmem:[%s2 + $0x8] sm:$0xff]
  %v110 = vld [vmem:[%s2 + $0x10] sm:$0xff]
  %v111 = vld [vmem:[%s2 + $0x18] sm:$0xff]
  %v112 = vld [vmem:[%s2 + $0x20] sm:$0xff]
  %v113 = vld [vmem:[%s2 + $0x28] sm:$0xff]
  %v114 = vld [vmem:[%s2 + $0x30] sm:$0xff]
  %v115 = vld [vmem:[%s2 + $0x38] sm:$0xff]
  %v116 = vld [vmem:[%s2 + $0x40] sm:$0xff]
  %v117 = vld [vmem:[%s2 + $0x48] sm:$0xff]
  %v118 = vld [vmem:[%s2 + $0x50] sm:$0xff]
  %v119 = vld [vmem:[%s2 + $0x58] sm:$0xff]
  %v120 = vld [vmem:[%s2 + $0x60] sm:$0xff]
  %v121 = vld [vmem:[%s2 + $0x68] sm:$0xff]
  %v122 = vld [vmem:[%s2 + $0x70] sm:$0xff]
  %v123 = vld [vmem:[%s2 + $0x78] sm:$0xff]
  %v124 = vld [vmem:[%s3] sm:$0x1]
  %v125 = vld [vmem:[%s4] sm:$0xff]
  %v126 = vld [vmem:[%s4 + $0x8] sm:$0xff]
  %v127 = vld [vmem:[%s4 + $0x10] sm:$0xff]
  %v128 = vld [vmem:[%s4 + $0x18] sm:$0xff]
  %v129 = vld [vmem:[%s4 + $0x20] sm:$0xff]
  %v130 = vld [vmem:[%s4 + $0x28] sm:$0xff]
  %v131 = vld [vmem:[%s4 + $0x30] sm:$0xff]
  %v132 = vld [vmem:[%s4 + $0x38] sm:$0xff]
  %v133 = vld [vmem:[%s4 + $0x40] sm:$0xff]
  %v134 = vld [vmem:[%s4 + $0x48] sm:$0xff]
  %v135 = vld [vmem:[%s4 + $0x50] sm:$0xff]
  %v136 = vld [vmem:[%s4 + $0x58] sm:$0xff]
  %v137 = vld [vmem:[%s4 + $0x60] sm:$0xff]
  %v138 = vld [vmem:[%s4 + $0x68] sm:$0xff]
  %v139 = vld [vmem:[%s4 + $0x70] sm:$0xff]
  %v140 = vld [vmem:[%s4 + $0x78] sm:$0xff]
  %v141 = vld [vmem:[%s5] sm:$0x1]
  %142 = vmatpush.xpose.msra.mxu0 %v107
  %143 = vmatpush.xpose.msra.mxu0 %v106
  %144 = vmatpush.xpose.msra.mxu0 %v105
  %145 = vmatpush.xpose.msra.mxu0 %v104
  %146 = vmatpush.xpose.msra.mxu0 %v103
  %147 = vmatpush.xpose.msra.mxu0 %v102
  %148 = vmatpush.xpose.msra.mxu0 %v101
  %149 = vmatpush.xpose.msra.mxu0 %v100
  %150 = vmatpush.xpose.msra.mxu0 %v99
  %151 = vmatpush.xpose.msra.mxu0 %v98
  %152 = vmatpush.xpose.msra.mxu0 %v97
  %153 = vmatpush.xpose.msra.mxu0 %v96
  %154 = vmatpush.xpose.msra.mxu0 %v95
  %155 = vmatpush.xpose.msra.mxu0 %v94
  %156 = vmatpush.xpose.msra.mxu0 %v93
  %157 = vmatpush.xpose.msra.mxu0 %v92
  %158 = vmatmul.f32.gmra.mxu0 %v76
  %v159 = vpop.f32.mrf.mxu0
  %v160 = vadd.f32 0.0, %v159
  %161 = vmatmul.f32.gmra.mxu0 %v77
  %v162 = vpop.f32.mrf.mxu0
  %v163 = vadd.f32 0.0, %v162
  %164 = vmatmul.f32.gmra.mxu0 %v78
  %v165 = vpop.f32.mrf.mxu0
  %v166 = vadd.f32 0.0, %v165
  %167 = vmatmul.f32.gmra.mxu0 %v79
  %v168 = vpop.f32.mrf.mxu0
  %v169 = vadd.f32 0.0, %v168
  %170 = vmatmul.f32.gmra.mxu0 %v80
  %v171 = vpop.f32.mrf.mxu0
  %v172 = vadd.f32 0.0, %v171
  %173 = vmatmul.f32.gmra.mxu0 %v81
  %v174 = vpop.f32.mrf.mxu0
  %v175 = vadd.f32 0.0, %v174
  %176 = vmatmul.f32.gmra.mxu0 %v82
  %v177 = vpop.f32.mrf.mxu0
  %v178 = vadd.f32 0.0, %v177
  %179 = vmatmul.f32.gmra.mxu0 %v83
  %v180 = vpop.f32.mrf.mxu0
  %v181 = vadd.f32 0.0, %v180
  %182 = vmatmul.f32.gmra.mxu0 %v84
  %v183 = vpop.f32.mrf.mxu0
  %v184 = vadd.f32 0.0, %v183
  %185 = vmatmul.f32.gmra.mxu0 %v85
  %v186 = vpop.f32.mrf.mxu0
  %v187 = vadd.f32 0.0, %v186
  %188 = vmatmul.f32.gmra.mxu0 %v86
  %v189 = vpop.f32.mrf.mxu0
  %v190 = vadd.f32 0.0, %v189
  %191 = vmatmul.f32.gmra.mxu0 %v87
  %v192 = vpop.f32.mrf.mxu0
  %v193 = vadd.f32 0.0, %v192
  %194 = vmatmul.f32.gmra.mxu0 %v88
  %v195 = vpop.f32.mrf.mxu0
  %v196 = vadd.f32 0.0, %v195
  %197 = vmatmul.f32.gmra.mxu0 %v89
  %v198 = vpop.f32.mrf.mxu0
  %v199 = vadd.f32 0.0, %v198
  %200 = vmatmul.f32.gmra.mxu0 %v90
  %v201 = vpop.f32.mrf.mxu0
  %v202 = vadd.f32 0.0, %v201
  %203 = vmatmul.f32.gmra.mxu0 %v91
  %v204 = vpop.f32.mrf.mxu0
  %v205 = vadd.f32 0.0, %v204
  %206 = vdwg.mxu0
  %208 = vset.pattern.permute.xlu0 0
  %209 = vperm.xlu0 %208, %v108
  %v210 = vpop.permute.xlu0 %209
  %213 = vset.pattern.permute.xlu0 0
  %214 = vperm.xlu0 %213, %v109
  %v215 = vpop.permute.xlu0 %214
  %218 = vset.pattern.permute.xlu0 0
  %219 = vperm.xlu0 %218, %v110
  %v220 = vpop.permute.xlu0 %219
  %223 = vset.pattern.permute.xlu0 0
  %224 = vperm.xlu0 %223, %v111
  %v225 = vpop.permute.xlu0 %224
  %228 = vset.pattern.permute.xlu0 0
  %229 = vperm.xlu0 %228, %v112
  %v230 = vpop.permute.xlu0 %229
  %233 = vset.pattern.permute.xlu0 0
  %234 = vperm.xlu0 %233, %v113
  %v235 = vpop.permute.xlu0 %234
  %238 = vset.pattern.permute.xlu0 0
  %239 = vperm.xlu0 %238, %v114
  %v240 = vpop.permute.xlu0 %239
  %243 = vset.pattern.permute.xlu0 0
  %244 = vperm.xlu0 %243, %v115
  %v245 = vpop.permute.xlu0 %244
  %248 = vset.pattern.permute.xlu0 0
  %249 = vperm.xlu0 %248, %v116
  %v250 = vpop.permute.xlu0 %249
  %253 = vset.pattern.permute.xlu0 0
  %254 = vperm.xlu0 %253, %v117
  %v255 = vpop.permute.xlu0 %254
  %258 = vset.pattern.permute.xlu0 0
  %259 = vperm.xlu0 %258, %v118
  %v260 = vpop.permute.xlu0 %259
  %263 = vset.pattern.permute.xlu0 0
  %264 = vperm.xlu0 %263, %v119
  %v265 = vpop.permute.xlu0 %264
  %268 = vset.pattern.permute.xlu0 0
  %269 = vperm.xlu0 %268, %v120
  %v270 = vpop.permute.xlu0 %269
  %273 = vset.pattern.permute.xlu0 0
  %274 = vperm.xlu0 %273, %v121
  %v275 = vpop.permute.xlu0 %274
  %278 = vset.pattern.permute.xlu0 0
  %279 = vperm.xlu0 %278, %v122
  %v280 = vpop.permute.xlu0 %279
  %283 = vset.pattern.permute.xlu0 0
  %284 = vperm.xlu0 %283, %v123
  %v285 = vpop.permute.xlu0 %284
  %v288 = vperm.slane %v124, 0
  %v290 = vadd.f32 %v210, %v288
  %v291 = vadd.f32 %v215, %v288
  %v292 = vadd.f32 %v220, %v288
  %v293 = vadd.f32 %v225, %v288
  %v294 = vadd.f32 %v230, %v288
  %v295 = vadd.f32 %v235, %v288
  %v296 = vadd.f32 %v240, %v288
  %v297 = vadd.f32 %v245, %v288
  %v298 = vadd.f32 %v250, %v288
  %v299 = vadd.f32 %v255, %v288
  %v300 = vadd.f32 %v260, %v288
  %v301 = vadd.f32 %v265, %v288
  %v302 = vadd.f32 %v270, %v288
  %v303 = vadd.f32 %v275, %v288
  %v304 = vadd.f32 %v280, %v288
  %v305 = vadd.f32 %v285, %v288
  %v306 = vmul.f32 %v160, 2.0
  %v307 = vmul.f32 %v163, 2.0
  %v308 = vmul.f32 %v166, 2.0
  %v309 = vmul.f32 %v169, 2.0
  %v310 = vmul.f32 %v172, 2.0
  %v311 = vmul.f32 %v175, 2.0
  %v312 = vmul.f32 %v178, 2.0
  %v313 = vmul.f32 %v181, 2.0
  %v314 = vmul.f32 %v184, 2.0
  %v315 = vmul.f32 %v187, 2.0
  %v316 = vmul.f32 %v190, 2.0
  %v317 = vmul.f32 %v193, 2.0
  %v318 = vmul.f32 %v196, 2.0
  %v319 = vmul.f32 %v199, 2.0
  %v320 = vmul.f32 %v202, 2.0
  %v321 = vmul.f32 %v205, 2.0
  %v322 = vsub.f32 %v290, %v306
  %v323 = vsub.f32 %v291, %v307
  %v324 = vsub.f32 %v292, %v308
  %v325 = vsub.f32 %v293, %v309
  %v326 = vsub.f32 %v294, %v310
  %v327 = vsub.f32 %v295, %v311
  %v328 = vsub.f32 %v296, %v312
  %v329 = vsub.f32 %v297, %v313
  %v330 = vsub.f32 %v298, %v314
  %v331 = vsub.f32 %v299, %v315
  %v332 = vsub.f32 %v300, %v316
  %v333 = vsub.f32 %v301, %v317
  %v334 = vsub.f32 %v302, %v318
  %v335 = vsub.f32 %v303, %v319
  %v336 = vsub.f32 %v304, %v320
  %v337 = vsub.f32 %v305, %v321
  %v338 = vmax.f32 %v322, 0.0
  %v339 = vmax.f32 %v323, 0.0
  %v340 = vmax.f32 %v324, 0.0
  %v341 = vmax.f32 %v325, 0.0
  %v342 = vmax.f32 %v326, 0.0
  %v343 = vmax.f32 %v327, 0.0
  %v344 = vmax.f32 %v328, 0.0
  %v345 = vmax.f32 %v329, 0.0
  %v346 = vmax.f32 %v330, 0.0
  %v347 = vmax.f32 %v331, 0.0
  %v348 = vmax.f32 %v332, 0.0
  %v349 = vmax.f32 %v333, 0.0
  %v350 = vmax.f32 %v334, 0.0
  %v351 = vmax.f32 %v335, 0.0
  %v352 = vmax.f32 %v336, 0.0
  %v353 = vmax.f32 %v337, 0.0
  %v354 = vrsqrt.pop %v338
  %v355 = vmul.f32 %v354, %v338
  %v356 = vmul.f32 %v355, %v354
  %v357 = vmul.f32 0.5, %v356
  %v358 = vsub.f32 1.5, %v357
  %v359 = vmul.f32 %v354, %v358
  %v360 = vmul.f32 %v338, %v359
  %vm361 = vcmp.eq.f32.partialorder %v338, inf
  %v362 = vsel %vm361, %v338, %v360
  %vm363 = vcmp.eq.f32.partialorder %v338, 0.0
  %v364 = vand.u32 %v338, 2147483648
  %v365 = vsel %vm363, %v364, %v362
  %v366 = vrsqrt.pop %v339
  %v367 = vmul.f32 %v366, %v339
  %v368 = vmul.f32 %v367, %v366
  %v369 = vmul.f32 0.5, %v368
  %v370 = vsub.f32 1.5, %v369
  %v371 = vmul.f32 %v366, %v370
  %v372 = vmul.f32 %v339, %v371
  %vm373 = vcmp.eq.f32.partialorder %v339, inf
  %v374 = vsel %vm373, %v339, %v372
  %vm375 = vcmp.eq.f32.partialorder %v339, 0.0
  %v376 = vand.u32 %v339, 2147483648
  %v377 = vsel %vm375, %v376, %v374
  %v378 = vrsqrt.pop %v340
  %v379 = vmul.f32 %v378, %v340
  %v380 = vmul.f32 %v379, %v378
  %v381 = vmul.f32 0.5, %v380
  %v382 = vsub.f32 1.5, %v381
  %v383 = vmul.f32 %v378, %v382
  %v384 = vmul.f32 %v340, %v383
  %vm385 = vcmp.eq.f32.partialorder %v340, inf
  %v386 = vsel %vm385, %v340, %v384
  %vm387 = vcmp.eq.f32.partialorder %v340, 0.0
  %v388 = vand.u32 %v340, 2147483648
  %v389 = vsel %vm387, %v388, %v386
  %v390 = vrsqrt.pop %v341
  %v391 = vmul.f32 %v390, %v341
  %v392 = vmul.f32 %v391, %v390
  %v393 = vmul.f32 0.5, %v392
  %v394 = vsub.f32 1.5, %v393
  %v395 = vmul.f32 %v390, %v394
  %v396 = vmul.f32 %v341, %v395
  %vm397 = vcmp.eq.f32.partialorder %v341, inf
  %v398 = vsel %vm397, %v341, %v396
  %vm399 = vcmp.eq.f32.partialorder %v341, 0.0
  %v400 = vand.u32 %v341, 2147483648
  %v401 = vsel %vm399, %v400, %v398
  %v402 = vrsqrt.pop %v342
  %v403 = vmul.f32 %v402, %v342
  %v404 = vmul.f32 %v403, %v402
  %v405 = vmul.f32 0.5, %v404
  %v406 = vsub.f32 1.5, %v405
  %v407 = vmul.f32 %v402, %v406
  %v408 = vmul.f32 %v342, %v407
  %vm409 = vcmp.eq.f32.partialorder %v342, inf
  %v410 = vsel %vm409, %v342, %v408
  %vm411 = vcmp.eq.f32.partialorder %v342, 0.0
  %v412 = vand.u32 %v342, 2147483648
  %v413 = vsel %vm411, %v412, %v410
  %v414 = vrsqrt.pop %v343
  %v415 = vmul.f32 %v414, %v343
  %v416 = vmul.f32 %v415, %v414
  %v417 = vmul.f32 0.5, %v416
  %v418 = vsub.f32 1.5, %v417
  %v419 = vmul.f32 %v414, %v418
  %v420 = vmul.f32 %v343, %v419
  %vm421 = vcmp.eq.f32.partialorder %v343, inf
  %v422 = vsel %vm421, %v343, %v420
  %vm423 = vcmp.eq.f32.partialorder %v343, 0.0
  %v424 = vand.u32 %v343, 2147483648
  %v425 = vsel %vm423, %v424, %v422
  %v426 = vrsqrt.pop %v344
  %v427 = vmul.f32 %v426, %v344
  %v428 = vmul.f32 %v427, %v426
  %v429 = vmul.f32 0.5, %v428
  %v430 = vsub.f32 1.5, %v429
  %v431 = vmul.f32 %v426, %v430
  %v432 = vmul.f32 %v344, %v431
  %vm433 = vcmp.eq.f32.partialorder %v344, inf
  %v434 = vsel %vm433, %v344, %v432
  %vm435 = vcmp.eq.f32.partialorder %v344, 0.0
  %v436 = vand.u32 %v344, 2147483648
  %v437 = vsel %vm435, %v436, %v434
  %v438 = vrsqrt.pop %v345
  %v439 = vmul.f32 %v438, %v345
  %v440 = vmul.f32 %v439, %v438
  %v441 = vmul.f32 0.5, %v440
  %v442 = vsub.f32 1.5, %v441
  %v443 = vmul.f32 %v438, %v442
  %v444 = vmul.f32 %v345, %v443
  %vm445 = vcmp.eq.f32.partialorder %v345, inf
  %v446 = vsel %vm445, %v345, %v444
  %vm447 = vcmp.eq.f32.partialorder %v345, 0.0
  %v448 = vand.u32 %v345, 2147483648
  %v449 = vsel %vm447, %v448, %v446
  %v450 = vrsqrt.pop %v346
  %v451 = vmul.f32 %v450, %v346
  %v452 = vmul.f32 %v451, %v450
  %v453 = vmul.f32 0.5, %v452
  %v454 = vsub.f32 1.5, %v453
  %v455 = vmul.f32 %v450, %v454
  %v456 = vmul.f32 %v346, %v455
  %vm457 = vcmp.eq.f32.partialorder %v346, inf
  %v458 = vsel %vm457, %v346, %v456
  %vm459 = vcmp.eq.f32.partialorder %v346, 0.0
  %v460 = vand.u32 %v346, 2147483648
  %v461 = vsel %vm459, %v460, %v458
  %v462 = vrsqrt.pop %v347
  %v463 = vmul.f32 %v462, %v347
  %v464 = vmul.f32 %v463, %v462
  %v465 = vmul.f32 0.5, %v464
  %v466 = vsub.f32 1.5, %v465
  %v467 = vmul.f32 %v462, %v466
  %v468 = vmul.f32 %v347, %v467
  %vm469 = vcmp.eq.f32.partialorder %v347, inf
  %v470 = vsel %vm469, %v347, %v468
  %vm471 = vcmp.eq.f32.partialorder %v347, 0.0
  %v472 = vand.u32 %v347, 2147483648
  %v473 = vsel %vm471, %v472, %v470
  %v474 = vrsqrt.pop %v348
  %v475 = vmul.f32 %v474, %v348
  %v476 = vmul.f32 %v475, %v474
  %v477 = vmul.f32 0.5, %v476
  %v478 = vsub.f32 1.5, %v477
  %v479 = vmul.f32 %v474, %v478
  %v480 = vmul.f32 %v348, %v479
  %vm481 = vcmp.eq.f32.partialorder %v348, inf
  %v482 = vsel %vm481, %v348, %v480
  %vm483 = vcmp.eq.f32.partialorder %v348, 0.0
  %v484 = vand.u32 %v348, 2147483648
  %v485 = vsel %vm483, %v484, %v482
  %v486 = vrsqrt.pop %v349
  %v487 = vmul.f32 %v486, %v349
  %v488 = vmul.f32 %v487, %v486
  %v489 = vmul.f32 0.5, %v488
  %v490 = vsub.f32 1.5, %v489
  %v491 = vmul.f32 %v486, %v490
  %v492 = vmul.f32 %v349, %v491
  %vm493 = vcmp.eq.f32.partialorder %v349, inf
  %v494 = vsel %vm493, %v349, %v492
  %vm495 = vcmp.eq.f32.partialorder %v349, 0.0
  %v496 = vand.u32 %v349, 2147483648
  %v497 = vsel %vm495, %v496, %v494
  %v498 = vrsqrt.pop %v350
  %v499 = vmul.f32 %v498, %v350
  %v500 = vmul.f32 %v499, %v498
  %v501 = vmul.f32 0.5, %v500
  %v502 = vsub.f32 1.5, %v501
  %v503 = vmul.f32 %v498, %v502
  %v504 = vmul.f32 %v350, %v503
  %vm505 = vcmp.eq.f32.partialorder %v350, inf
  %v506 = vsel %vm505, %v350, %v504
  %vm507 = vcmp.eq.f32.partialorder %v350, 0.0
  %v508 = vand.u32 %v350, 2147483648
  %v509 = vsel %vm507, %v508, %v506
  %v510 = vrsqrt.pop %v351
  %v511 = vmul.f32 %v510, %v351
  %v512 = vmul.f32 %v511, %v510
  %v513 = vmul.f32 0.5, %v512
  %v514 = vsub.f32 1.5, %v513
  %v515 = vmul.f32 %v510, %v514
  %v516 = vmul.f32 %v351, %v515
  %vm517 = vcmp.eq.f32.partialorder %v351, inf
  %v518 = vsel %vm517, %v351, %v516
  %vm519 = vcmp.eq.f32.partialorder %v351, 0.0
  %v520 = vand.u32 %v351, 2147483648
  %v521 = vsel %vm519, %v520, %v518
  %v522 = vrsqrt.pop %v352
  %v523 = vmul.f32 %v522, %v352
  %v524 = vmul.f32 %v523, %v522
  %v525 = vmul.f32 0.5, %v524
  %v526 = vsub.f32 1.5, %v525
  %v527 = vmul.f32 %v522, %v526
  %v528 = vmul.f32 %v352, %v527
  %vm529 = vcmp.eq.f32.partialorder %v352, inf
  %v530 = vsel %vm529, %v352, %v528
  %vm531 = vcmp.eq.f32.partialorder %v352, 0.0
  %v532 = vand.u32 %v352, 2147483648
  %v533 = vsel %vm531, %v532, %v530
  %v534 = vrsqrt.pop %v353
  %v535 = vmul.f32 %v534, %v353
  %v536 = vmul.f32 %v535, %v534
  %v537 = vmul.f32 0.5, %v536
  %v538 = vsub.f32 1.5, %v537
  %v539 = vmul.f32 %v534, %v538
  %v540 = vmul.f32 %v353, %v539
  %vm541 = vcmp.eq.f32.partialorder %v353, inf
  %v542 = vsel %vm541, %v353, %v540
  %vm543 = vcmp.eq.f32.partialorder %v353, 0.0
  %v544 = vand.u32 %v353, 2147483648
  %v545 = vsel %vm543, %v544, %v542
  %546 = vset.pattern.permute.xlu0 0
  %547 = vperm.xlu0 %546, %v125
  %v548 = vpop.permute.xlu0 %547
  %549 = vset.pattern.permute.xlu0 0
  %550 = vperm.xlu0 %549, %v126
  %v551 = vpop.permute.xlu0 %550
  %552 = vset.pattern.permute.xlu0 0
  %553 = vperm.xlu0 %552, %v127
  %v554 = vpop.permute.xlu0 %553
  %555 = vset.pattern.permute.xlu0 0
  %556 = vperm.xlu0 %555, %v128
  %v557 = vpop.permute.xlu0 %556
  %558 = vset.pattern.permute.xlu0 0
  %559 = vperm.xlu0 %558, %v129
  %v560 = vpop.permute.xlu0 %559
  %561 = vset.pattern.permute.xlu0 0
  %562 = vperm.xlu0 %561, %v130
  %v563 = vpop.permute.xlu0 %562
  %564 = vset.pattern.permute.xlu0 0
  %565 = vperm.xlu0 %564, %v131
  %v566 = vpop.permute.xlu0 %565
  %567 = vset.pattern.permute.xlu0 0
  %568 = vperm.xlu0 %567, %v132
  %v569 = vpop.permute.xlu0 %568
  %570 = vset.pattern.permute.xlu0 0
  %571 = vperm.xlu0 %570, %v133
  %v572 = vpop.permute.xlu0 %571
  %573 = vset.pattern.permute.xlu0 0
  %574 = vperm.xlu0 %573, %v134
  %v575 = vpop.permute.xlu0 %574
  %576 = vset.pattern.permute.xlu0 0
  %577 = vperm.xlu0 %576, %v135
  %v578 = vpop.permute.xlu0 %577
  %579 = vset.pattern.permute.xlu0 0
  %580 = vperm.xlu0 %579, %v136
  %v581 = vpop.permute.xlu0 %580
  %582 = vset.pattern.permute.xlu0 0
  %583 = vperm.xlu0 %582, %v137
  %v584 = vpop.permute.xlu0 %583
  %585 = vset.pattern.permute.xlu0 0
  %586 = vperm.xlu0 %585, %v138
  %v587 = vpop.permute.xlu0 %586
  %588 = vset.pattern.permute.xlu0 0
  %589 = vperm.xlu0 %588, %v139
  %v590 = vpop.permute.xlu0 %589
  %591 = vset.pattern.permute.xlu0 0
  %592 = vperm.xlu0 %591, %v140
  %v593 = vpop.permute.xlu0 %592
  %v594 = vperm.slane %v141, 0
  %vm595 = vcmp.eq.s32.totalorder %v548, %v594
  %vm596 = vcmp.eq.s32.totalorder %v551, %v594
  %vm597 = vcmp.eq.s32.totalorder %v554, %v594
  %vm598 = vcmp.eq.s32.totalorder %v557, %v594
  %vm599 = vcmp.eq.s32.totalorder %v560, %v594
  %vm600 = vcmp.eq.s32.totalorder %v563, %v594
  %vm601 = vcmp.eq.s32.totalorder %v566, %v594
  %vm602 = vcmp.eq.s32.totalorder %v569, %v594
  %vm603 = vcmp.eq.s32.totalorder %v572, %v594
  %vm604 = vcmp.eq.s32.totalorder %v575, %v594
  %vm605 = vcmp.eq.s32.totalorder %v578, %v594
  %vm606 = vcmp.eq.s32.totalorder %v581, %v594
  %vm607 = vcmp.eq.s32.totalorder %v584, %v594
  %vm608 = vcmp.eq.s32.totalorder %v587, %v594
  %vm609 = vcmp.eq.s32.totalorder %v590, %v594
  %vm610 = vcmp.eq.s32.totalorder %v593, %v594
  %s611 = smul.u32 0, 128
  %v612 = vlaneseq
  %v613 = vshrl.u32 %v612, 7
  %v614 = vadd.s32 %v613, 8
  %v615 = vadd.s32 %v613, 16
  %v616 = vadd.s32 %v613, 24
  %v617 = vadd.s32 %v613, 32
  %v618 = vadd.s32 %v613, 40
  %v619 = vadd.s32 %v613, 48
  %v620 = vadd.s32 %v613, 56
  %v621 = vadd.s32 %v613, 64
  %v622 = vadd.s32 %v613, 72
  %v623 = vadd.s32 %v613, 80
  %v624 = vadd.s32 %v613, 88
  %v625 = vadd.s32 %v613, 96
  %v626 = vadd.s32 %v613, 104
  %v627 = vadd.s32 %v613, 112
  %v628 = vadd.s32 %v613, 120
  %v629 = vstv %s611
  %v630 = vadd.s32 %v629, %v613
  %v631 = vadd.s32 %v629, %v614
  %v632 = vadd.s32 %v629, %v615
  %v633 = vadd.s32 %v629, %v616
  %v634 = vadd.s32 %v629, %v617
  %v635 = vadd.s32 %v629, %v618
  %v636 = vadd.s32 %v629, %v619
  %v637 = vadd.s32 %v629, %v620
  %v638 = vadd.s32 %v629, %v621
  %v639 = vadd.s32 %v629, %v622
  %v640 = vadd.s32 %v629, %v623
  %v641 = vadd.s32 %v629, %v624
  %v642 = vadd.s32 %v629, %v625
  %v643 = vadd.s32 %v629, %v626
  %v644 = vadd.s32 %v629, %v627
  %v645 = vadd.s32 %v629, %v628
  %s646 = smul.u32 0, 128
  %v647 = vlaneseq
  %v648 = vand.u32 %v647, 127
  %v649 = vstv %s646
  %v650 = vadd.s32 %v649, %v648
  %vm651 = vcmp.ne.s32.totalorder %v630, %v650
  %vm652 = vcmp.ne.s32.totalorder %v631, %v650
  %vm653 = vcmp.ne.s32.totalorder %v632, %v650
  %vm654 = vcmp.ne.s32.totalorder %v633, %v650
  %vm655 = vcmp.ne.s32.totalorder %v634, %v650
  %vm656 = vcmp.ne.s32.totalorder %v635, %v650
  %vm657 = vcmp.ne.s32.totalorder %v636, %v650
  %vm658 = vcmp.ne.s32.totalorder %v637, %v650
  %vm659 = vcmp.ne.s32.totalorder %v638, %v650
  %vm660 = vcmp.ne.s32.totalorder %v639, %v650
  %vm661 = vcmp.ne.s32.totalorder %v640, %v650
  %vm662 = vcmp.ne.s32.totalorder %v641, %v650
  %vm663 = vcmp.ne.s32.totalorder %v642, %v650
  %vm664 = vcmp.ne.s32.totalorder %v643, %v650
  %vm665 = vcmp.ne.s32.totalorder %v644, %v650
  %vm666 = vcmp.ne.s32.totalorder %v645, %v650
  %vm667 = vmand %vm595, %vm651
  %vm668 = vmand %vm596, %vm652
  %vm669 = vmand %vm597, %vm653
  %vm670 = vmand %vm598, %vm654
  %vm671 = vmand %vm599, %vm655
  %vm672 = vmand %vm600, %vm656
  %vm673 = vmand %vm601, %vm657
  %vm674 = vmand %vm602, %vm658
  %vm675 = vmand %vm603, %vm659
  %vm676 = vmand %vm604, %vm660
  %vm677 = vmand %vm605, %vm661
  %vm678 = vmand %vm606, %vm662
  %vm679 = vmand %vm607, %vm663
  %vm680 = vmand %vm608, %vm664
  %vm681 = vmand %vm609, %vm665
  %vm682 = vmand %vm610, %vm666
  %vm683 = vmxor %vm595, 1
  %vm684 = vmxor %vm596, 1
  %vm685 = vmxor %vm597, 1
  %vm686 = vmxor %vm598, 1
  %vm687 = vmxor %vm599, 1
  %vm688 = vmxor %vm600, 1
  %vm689 = vmxor %vm601, 1
  %vm690 = vmxor %vm602, 1
  %vm691 = vmxor %vm603, 1
  %vm692 = vmxor %vm604, 1
  %vm693 = vmxor %vm605, 1
  %vm694 = vmxor %vm606, 1
  %vm695 = vmxor %vm607, 1
  %vm696 = vmxor %vm608, 1
  %vm697 = vmxor %vm609, 1
  %vm698 = vmxor %vm610, 1
  %vm699 = vcmp.lt.s32.totalorder %v650, 8
  %vm700 = vmand %vm667, %vm699
  %vm701 = vmand %vm668, %vm699
  %vm702 = vmand %vm669, %vm699
  %vm703 = vmand %vm670, %vm699
  %vm704 = vmand %vm671, %vm699
  %vm705 = vmand %vm672, %vm699
  %vm706 = vmand %vm673, %vm699
  %vm707 = vmand %vm674, %vm699
  %vm708 = vmand %vm675, %vm699
  %vm709 = vmand %vm676, %vm699
  %vm710 = vmand %vm677, %vm699
  %vm711 = vmand %vm678, %vm699
  %vm712 = vmand %vm679, %vm699
  %vm713 = vmand %vm680, %vm699
  %vm714 = vmand %vm681, %vm699
  %vm715 = vmand %vm682, %vm699
  %vm716 = vmand %vm683, %vm699
  %vm717 = vmand %vm684, %vm699
  %vm718 = vmand %vm685, %vm699
  %vm719 = vmand %vm686, %vm699
  %vm720 = vmand %vm687, %vm699
  %vm721 = vmand %vm688, %vm699
  %vm722 = vmand %vm689, %vm699
  %vm723 = vmand %vm690, %vm699
  %vm724 = vmand %vm691, %vm699
  %vm725 = vmand %vm692, %vm699
  %vm726 = vmand %vm693, %vm699
  %vm727 = vmand %vm694, %vm699
  %vm728 = vmand %vm695, %vm699
  %vm729 = vmand %vm696, %vm699
  %vm730 = vmand %vm697, %vm699
  %vm731 = vmand %vm698, %vm699
  %v732 = vsel %vm699, %v365, 0.0
  %v733 = vsel %vm699, %v377, 0.0
  %v734 = vsel %vm699, %v389, 0.0
  %v735 = vsel %vm699, %v401, 0.0
  %v736 = vsel %vm699, %v413, 0.0
  %v737 = vsel %vm699, %v425, 0.0
  %v738 = vsel %vm699, %v437, 0.0
  %v739 = vsel %vm699, %v449, 0.0
  %v740 = vsel %vm699, %v461, 0.0
  %v741 = vsel %vm699, %v473, 0.0
  %v742 = vsel %vm699, %v485, 0.0
  %v743 = vsel %vm699, %v497, 0.0
  %v744 = vsel %vm699, %v509, 0.0
  %v745 = vsel %vm699, %v521, 0.0
  %v746 = vsel %vm699, %v533, 0.0
  %v747 = vsel %vm699, %v545, 0.0
  %v748 = vld [vmem:[#allocation2] sm:$0xff]
  %v749 = vld [vmem:[#allocation2 + $0x8] sm:$0xff]
  %v750 = vld [vmem:[#allocation2 + $0x10] sm:$0xff]
  %v751 = vld [vmem:[#allocation2 + $0x18] sm:$0xff]
  %v752 = vld [vmem:[#allocation2 + $0x20] sm:$0xff]
  %v753 = vld [vmem:[#allocation2 + $0x28] sm:$0xff]
  %v754 = vld [vmem:[#allocation2 + $0x30] sm:$0xff]
  %v755 = vld [vmem:[#allocation2 + $0x38] sm:$0xff]
  %v756 = vld [vmem:[#allocation2 + $0x40] sm:$0xff]
  %v757 = vld [vmem:[#allocation2 + $0x48] sm:$0xff]
  %v758 = vld [vmem:[#allocation2 + $0x50] sm:$0xff]
  %v759 = vld [vmem:[#allocation2 + $0x58] sm:$0xff]
  %v760 = vld [vmem:[#allocation2 + $0x60] sm:$0xff]
  %v761 = vld [vmem:[#allocation2 + $0x68] sm:$0xff]
  %v762 = vld [vmem:[#allocation2 + $0x70] sm:$0xff]
  %v763 = vld [vmem:[#allocation2 + $0x78] sm:$0xff]
  %v764 = vsel %vm700, %v365, 0.0
  %v765 = vsel %vm701, %v377, 0.0
  %v766 = vsel %vm702, %v389, 0.0
  %v767 = vsel %vm703, %v401, 0.0
  %v768 = vsel %vm704, %v413, 0.0
  %v769 = vsel %vm705, %v425, 0.0
  %v770 = vsel %vm706, %v437, 0.0
  %v771 = vsel %vm707, %v449, 0.0
  %v772 = vsel %vm708, %v461, 0.0
  %v773 = vsel %vm709, %v473, 0.0
  %v774 = vsel %vm710, %v485, 0.0
  %v775 = vsel %vm711, %v497, 0.0
  %v776 = vsel %vm712, %v509, 0.0
  %v777 = vsel %vm713, %v521, 0.0
  %v778 = vsel %vm714, %v533, 0.0
  %v779 = vsel %vm715, %v545, 0.0
  %780 = vmax.xlane.f32.xlu0 %v764
  %v781 = vpop.xlane.xlu0 %780
  %782 = vmax.xlane.f32.xlu0 %v765
  %v783 = vpop.xlane.xlu0 %782
  %784 = vmax.xlane.f32.xlu0 %v766
  %v785 = vpop.xlane.xlu0 %784
  %786 = vmax.xlane.f32.xlu0 %v767
  %v787 = vpop.xlane.xlu0 %786
  %788 = vmax.xlane.f32.xlu0 %v768
  %v789 = vpop.xlane.xlu0 %788
  %790 = vmax.xlane.f32.xlu0 %v769
  %v791 = vpop.xlane.xlu0 %790
  %792 = vmax.xlane.f32.xlu0 %v770
  %v793 = vpop.xlane.xlu0 %792
  %794 = vmax.xlane.f32.xlu0 %v771
  %v795 = vpop.xlane.xlu0 %794
  %796 = vmax.xlane.f32.xlu0 %v772
  %v797 = vpop.xlane.xlu0 %796
  %798 = vmax.xlane.f32.xlu0 %v773
  %v799 = vpop.xlane.xlu0 %798
  %800 = vmax.xlane.f32.xlu0 %v774
  %v801 = vpop.xlane.xlu0 %800
  %802 = vmax.xlane.f32.xlu0 %v775
  %v803 = vpop.xlane.xlu0 %802
  %804 = vmax.xlane.f32.xlu0 %v776
  %v805 = vpop.xlane.xlu0 %804
  %806 = vmax.xlane.f32.xlu0 %v777
  %v807 = vpop.xlane.xlu0 %806
  %808 = vmax.xlane.f32.xlu0 %v778
  %v809 = vpop.xlane.xlu0 %808
  %810 = vmax.xlane.f32.xlu0 %v779
  %v811 = vpop.xlane.xlu0 %810
  %v812 = vmax.f32 %v748, %v781
  %v813 = vmax.f32 %v749, %v783
  %v814 = vmax.f32 %v750, %v785
  %v815 = vmax.f32 %v751, %v787
  %v816 = vmax.f32 %v752, %v789
  %v817 = vmax.f32 %v753, %v791
  %v818 = vmax.f32 %v754, %v793
  %v819 = vmax.f32 %v755, %v795
  %v820 = vmax.f32 %v756, %v797
  %v821 = vmax.f32 %v757, %v799
  %v822 = vmax.f32 %v758, %v801
  %v823 = vmax.f32 %v759, %v803
  %v824 = vmax.f32 %v760, %v805
  %v825 = vmax.f32 %v761, %v807
  %v826 = vmax.f32 %v762, %v809
  %v827 = vmax.f32 %v763, %v811
  %vm828 = vcmask 7168
  %829 = vst.msk [vmem:[#allocation2] sm:$0xff] %vm828, %v812
  %830 = vst.msk [vmem:[#allocation2 + $0x8] sm:$0xff] %vm828, %v813
  %831 = vst.msk [vmem:[#allocation2 + $0x10] sm:$0xff] %vm828, %v814
  %832 = vst.msk [vmem:[#allocation2 + $0x18] sm:$0xff] %vm828, %v815
  %833 = vst.msk [vmem:[#allocation2 + $0x20] sm:$0xff] %vm828, %v816
  %834 = vst.msk [vmem:[#allocation2 + $0x28] sm:$0xff] %vm828, %v817
  %835 = vst.msk [vmem:[#allocation2 + $0x30] sm:$0xff] %vm828, %v818
  %836 = vst.msk [vmem:[#allocation2 + $0x38] sm:$0xff] %vm828, %v819
  %837 = vst.msk [vmem:[#allocation2 + $0x40] sm:$0xff] %vm828, %v820
  %838 = vst.msk [vmem:[#allocation2 + $0x48] sm:$0xff] %vm828, %v821
  %839 = vst.msk [vmem:[#allocation2 + $0x50] sm:$0xff] %vm828, %v822
  %840 = vst.msk [vmem:[#allocation2 + $0x58] sm:$0xff] %vm828, %v823
  %841 = vst.msk [vmem:[#allocation2 + $0x60] sm:$0xff] %vm828, %v824
  %842 = vst.msk [vmem:[#allocation2 + $0x68] sm:$0xff] %vm828, %v825
  %843 = vst.msk [vmem:[#allocation2 + $0x70] sm:$0xff] %vm828, %v826
  %844 = vst.msk [vmem:[#allocation2 + $0x78] sm:$0xff] %vm828, %v827
  %v845 = vld [vmem:[#allocation3] sm:$0xff]
  %v846 = vld [vmem:[#allocation3 + $0x8] sm:$0xff]
  %v847 = vld [vmem:[#allocation3 + $0x10] sm:$0xff]
  %v848 = vld [vmem:[#allocation3 + $0x18] sm:$0xff]
  %v849 = vld [vmem:[#allocation3 + $0x20] sm:$0xff]
  %v850 = vld [vmem:[#allocation3 + $0x28] sm:$0xff]
  %v851 = vld [vmem:[#allocation3 + $0x30] sm:$0xff]
  %v852 = vld [vmem:[#allocation3 + $0x38] sm:$0xff]
  %v853 = vld [vmem:[#allocation3 + $0x40] sm:$0xff]
  %v854 = vld [vmem:[#allocation3 + $0x48] sm:$0xff]
  %v855 = vld [vmem:[#allocation3 + $0x50] sm:$0xff]
  %v856 = vld [vmem:[#allocation3 + $0x58] sm:$0xff]
  %v857 = vld [vmem:[#allocation3 + $0x60] sm:$0xff]
  %v858 = vld [vmem:[#allocation3 + $0x68] sm:$0xff]
  %v859 = vld [vmem:[#allocation3 + $0x70] sm:$0xff]
  %v860 = vld [vmem:[#allocation3 + $0x78] sm:$0xff]
  %v861 = vsel %vm716, %v365, 3e+38
  %v862 = vsel %vm717, %v377, 3e+38
  %v863 = vsel %vm718, %v389, 3e+38
  %v864 = vsel %vm719, %v401, 3e+38
  %v865 = vsel %vm720, %v413, 3e+38
  %v866 = vsel %vm721, %v425, 3e+38
  %v867 = vsel %vm722, %v437, 3e+38
  %v868 = vsel %vm723, %v449, 3e+38
  %v869 = vsel %vm724, %v461, 3e+38
  %v870 = vsel %vm725, %v473, 3e+38
  %v871 = vsel %vm726, %v485, 3e+38
  %v872 = vsel %vm727, %v497, 3e+38
  %v873 = vsel %vm728, %v509, 3e+38
  %v874 = vsel %vm729, %v521, 3e+38
  %v875 = vsel %vm730, %v533, 3e+38
  %v876 = vsel %vm731, %v545, 3e+38
  %877 = vmin.xlane.f32.xlu0 %v861
  %v878 = vpop.xlane.xlu0 %877
  %879 = vmin.xlane.f32.xlu0 %v862
  %v880 = vpop.xlane.xlu0 %879
  %881 = vmin.xlane.f32.xlu0 %v863
  %v882 = vpop.xlane.xlu0 %881
  %883 = vmin.xlane.f32.xlu0 %v864
  %v884 = vpop.xlane.xlu0 %883
  %885 = vmin.xlane.f32.xlu0 %v865
  %v886 = vpop.xlane.xlu0 %885
  %887 = vmin.xlane.f32.xlu0 %v866
  %v888 = vpop.xlane.xlu0 %887
  %889 = vmin.xlane.f32.xlu0 %v867
  %v890 = vpop.xlane.xlu0 %889
  %891 = vmin.xlane.f32.xlu0 %v868
  %v892 = vpop.xlane.xlu0 %891
  %893 = vmin.xlane.f32.xlu0 %v869
  %v894 = vpop.xlane.xlu0 %893
  %895 = vmin.xlane.f32.xlu0 %v870
  %v896 = vpop.xlane.xlu0 %895
  %897 = vmin.xlane.f32.xlu0 %v871
  %v898 = vpop.xlane.xlu0 %897
  %899 = vmin.xlane.f32.xlu0 %v872
  %v900 = vpop.xlane.xlu0 %899
  %901 = vmin.xlane.f32.xlu0 %v873
  %v902 = vpop.xlane.xlu0 %901
  %903 = vmin.xlane.f32.xlu0 %v874
  %v904 = vpop.xlane.xlu0 %903
  %905 = vmin.xlane.f32.xlu0 %v875
  %v906 = vpop.xlane.xlu0 %905
  %907 = vmin.xlane.f32.xlu0 %v876
  %v908 = vpop.xlane.xlu0 %907
  %v909 = vmin.f32 %v845, %v878
  %v910 = vmin.f32 %v846, %v880
  %v911 = vmin.f32 %v847, %v882
  %v912 = vmin.f32 %v848, %v884
  %v913 = vmin.f32 %v849, %v886
  %v914 = vmin.f32 %v850, %v888
  %v915 = vmin.f32 %v851, %v890
  %v916 = vmin.f32 %v852, %v892
  %v917 = vmin.f32 %v853, %v894
  %v918 = vmin.f32 %v854, %v896
  %v919 = vmin.f32 %v855, %v898
  %v920 = vmin.f32 %v856, %v900
  %v921 = vmin.f32 %v857, %v902
  %v922 = vmin.f32 %v858, %v904
  %v923 = vmin.f32 %v859, %v906
  %v924 = vmin.f32 %v860, %v908
  %925 = vst.msk [vmem:[#allocation3] sm:$0xff] %vm828, %v909
  %926 = vst.msk [vmem:[#allocation3 + $0x8] sm:$0xff] %vm828, %v910
  %927 = vst.msk [vmem:[#allocation3 + $0x10] sm:$0xff] %vm828, %v911
  %928 = vst.msk [vmem:[#allocation3 + $0x18] sm:$0xff] %vm828, %v912
  %929 = vst.msk [vmem:[#allocation3 + $0x20] sm:$0xff] %vm828, %v913
  %930 = vst.msk [vmem:[#allocation3 + $0x28] sm:$0xff] %vm828, %v914
  %931 = vst.msk [vmem:[#allocation3 + $0x30] sm:$0xff] %vm828, %v915
  %932 = vst.msk [vmem:[#allocation3 + $0x38] sm:$0xff] %vm828, %v916
  %933 = vst.msk [vmem:[#allocation3 + $0x40] sm:$0xff] %vm828, %v917
  %934 = vst.msk [vmem:[#allocation3 + $0x48] sm:$0xff] %vm828, %v918
  %935 = vst.msk [vmem:[#allocation3 + $0x50] sm:$0xff] %vm828, %v919
  %936 = vst.msk [vmem:[#allocation3 + $0x58] sm:$0xff] %vm828, %v920
  %937 = vst.msk [vmem:[#allocation3 + $0x60] sm:$0xff] %vm828, %v921
  %938 = vst.msk [vmem:[#allocation3 + $0x68] sm:$0xff] %vm828, %v922
  %939 = vst.msk [vmem:[#allocation3 + $0x70] sm:$0xff] %vm828, %v923
  %940 = vst.msk [vmem:[#allocation3 + $0x78] sm:$0xff] %vm828, %v924
  %v941 = vld [vmem:[#allocation4] sm:$0xff]
  %v942 = vld [vmem:[#allocation4 + $0x8] sm:$0xff]
  %v943 = vld [vmem:[#allocation4 + $0x10] sm:$0xff]
  %v944 = vld [vmem:[#allocation4 + $0x18] sm:$0xff]
  %v945 = vld [vmem:[#allocation4 + $0x20] sm:$0xff]
  %v946 = vld [vmem:[#allocation4 + $0x28] sm:$0xff]
  %v947 = vld [vmem:[#allocation4 + $0x30] sm:$0xff]
  %v948 = vld [vmem:[#allocation4 + $0x38] sm:$0xff]
  %v949 = vld [vmem:[#allocation4 + $0x40] sm:$0xff]
  %v950 = vld [vmem:[#allocation4 + $0x48] sm:$0xff]
  %v951 = vld [vmem:[#allocation4 + $0x50] sm:$0xff]
  %v952 = vld [vmem:[#allocation4 + $0x58] sm:$0xff]
  %v953 = vld [vmem:[#allocation4 + $0x60] sm:$0xff]
  %v954 = vld [vmem:[#allocation4 + $0x68] sm:$0xff]
  %v955 = vld [vmem:[#allocation4 + $0x70] sm:$0xff]
  %v956 = vld [vmem:[#allocation4 + $0x78] sm:$0xff]
  %957 = vmax.xlane.f32.xlu0 %v732
  %v958 = vpop.xlane.xlu0 %957
  %959 = vmax.xlane.f32.xlu0 %v733
  %v960 = vpop.xlane.xlu0 %959
  %961 = vmax.xlane.f32.xlu0 %v734
  %v962 = vpop.xlane.xlu0 %961
  %963 = vmax.xlane.f32.xlu0 %v735
  %v964 = vpop.xlane.xlu0 %963
  %965 = vmax.xlane.f32.xlu0 %v736
  %v966 = vpop.xlane.xlu0 %965
  %967 = vmax.xlane.f32.xlu0 %v737
  %v968 = vpop.xlane.xlu0 %967
  %969 = vmax.xlane.f32.xlu0 %v738
  %v970 = vpop.xlane.xlu0 %969
  %971 = vmax.xlane.f32.xlu0 %v739
  %v972 = vpop.xlane.xlu0 %971
  %973 = vmax.xlane.f32.xlu0 %v740
  %v974 = vpop.xlane.xlu0 %973
  %975 = vmax.xlane.f32.xlu0 %v741
  %v976 = vpop.xlane.xlu0 %975
  %977 = vmax.xlane.f32.xlu0 %v742
  %v978 = vpop.xlane.xlu0 %977
  %979 = vmax.xlane.f32.xlu0 %v743
  %v980 = vpop.xlane.xlu0 %979
  %981 = vmax.xlane.f32.xlu0 %v744
  %v982 = vpop.xlane.xlu0 %981
  %983 = vmax.xlane.f32.xlu0 %v745
  %v984 = vpop.xlane.xlu0 %983
  %985 = vmax.xlane.f32.xlu0 %v746
  %v986 = vpop.xlane.xlu0 %985
  %987 = vmax.xlane.f32.xlu0 %v747
  %v988 = vpop.xlane.xlu0 %987
  %v989 = vmax.f32 %v941, %v958
  %v990 = vmax.f32 %v942, %v960
  %v991 = vmax.f32 %v943, %v962
  %v992 = vmax.f32 %v944, %v964
  %v993 = vmax.f32 %v945, %v966
  %v994 = vmax.f32 %v946, %v968
  %v995 = vmax.f32 %v947, %v970
  %v996 = vmax.f32 %v948, %v972
  %v997 = vmax.f32 %v949, %v974
  %v998 = vmax.f32 %v950, %v976
  %v999 = vmax.f32 %v951, %v978
  %v1000 = vmax.f32 %v952, %v980
  %v1001 = vmax.f32 %v953, %v982
  %v1002 = vmax.f32 %v954, %v984
  %v1003 = vmax.f32 %v955, %v986
  %v1004 = vmax.f32 %v956, %v988
  %1005 = vst.msk [vmem:[#allocation4] sm:$0xff] %vm828, %v989
  %1006 = vst.msk [vmem:[#allocation4 + $0x8] sm:$0xff] %vm828, %v990
  %1007 = vst.msk [vmem:[#allocation4 + $0x10] sm:$0xff] %vm828, %v991
  %1008 = vst.msk [vmem:[#allocation4 + $0x18] sm:$0xff] %vm828, %v992
  %1009 = vst.msk [vmem:[#allocation4 + $0x20] sm:$0xff] %vm828, %v993
  %1010 = vst.msk [vmem:[#allocation4 + $0x28] sm:$0xff] %vm828, %v994
  %1011 = vst.msk [vmem:[#allocation4 + $0x30] sm:$0xff] %vm828, %v995
  %1012 = vst.msk [vmem:[#allocation4 + $0x38] sm:$0xff] %vm828, %v996
  %1013 = vst.msk [vmem:[#allocation4 + $0x40] sm:$0xff] %vm828, %v997
  %1014 = vst.msk [vmem:[#allocation4 + $0x48] sm:$0xff] %vm828, %v998
  %1015 = vst.msk [vmem:[#allocation4 + $0x50] sm:$0xff] %vm828, %v999
  %1016 = vst.msk [vmem:[#allocation4 + $0x58] sm:$0xff] %vm828, %v1000
  %1017 = vst.msk [vmem:[#allocation4 + $0x60] sm:$0xff] %vm828, %v1001
  %1018 = vst.msk [vmem:[#allocation4 + $0x68] sm:$0xff] %vm828, %v1002
  %1019 = vst.msk [vmem:[#allocation4 + $0x70] sm:$0xff] %vm828, %v1003
  %1020 = vst.msk [vmem:[#allocation4 + $0x78] sm:$0xff] %vm828, %v1004
  // Predicated region
  $region30: #{tpu_custom_call.1} parent=0 // pred_check
    %p1021 = pneg %p23
  $region31: #{tpu_custom_call.1} parent=0 // pred_check_branch
    %1023 = sbr.rel (%p1021) target = $region33
  $region32: #{tpu_custom_call.1} parent=0 // pred_region
    %v1024 = vld [vmem:[#allocation3] sm:$0xff]
    %v1025 = vld [vmem:[#allocation3 + $0x8] sm:$0xff]
    %v1026 = vld [vmem:[#allocation3 + $0x10] sm:$0xff]
    %v1027 = vld [vmem:[#allocation3 + $0x18] sm:$0xff]
    %v1028 = vld [vmem:[#allocation3 + $0x20] sm:$0xff]
    %v1029 = vld [vmem:[#allocation3 + $0x28] sm:$0xff]
    %v1030 = vld [vmem:[#allocation3 + $0x30] sm:$0xff]
    %v1031 = vld [vmem:[#allocation3 + $0x38] sm:$0xff]
    %v1032 = vld [vmem:[#allocation3 + $0x40] sm:$0xff]
    %v1033 = vld [vmem:[#allocation3 + $0x48] sm:$0xff]
    %v1034 = vld [vmem:[#allocation3 + $0x50] sm:$0xff]
    %v1035 = vld [vmem:[#allocation3 + $0x58] sm:$0xff]
    %v1036 = vld [vmem:[#allocation3 + $0x60] sm:$0xff]
    %v1037 = vld [vmem:[#allocation3 + $0x68] sm:$0xff]
    %v1038 = vld [vmem:[#allocation3 + $0x70] sm:$0xff]
    %v1039 = vld [vmem:[#allocation3 + $0x78] sm:$0xff]
    %v1040 = vld [vmem:[#allocation4] sm:$0xff]
    %v1041 = vld [vmem:[#allocation4 + $0x8] sm:$0xff]
    %v1042 = vld [vmem:[#allocation4 + $0x10] sm:$0xff]
    %v1043 = vld [vmem:[#allocation4 + $0x18] sm:$0xff]
    %v1044 = vld [vmem:[#allocation4 + $0x20] sm:$0xff]
    %v1045 = vld [vmem:[#allocation4 + $0x28] sm:$0xff]
    %v1046 = vld [vmem:[#allocation4 + $0x30] sm:$0xff]
    %v1047 = vld [vmem:[#allocation4 + $0x38] sm:$0xff]
    %v1048 = vld [vmem:[#allocation4 + $0x40] sm:$0xff]
    %v1049 = vld [vmem:[#allocation4 + $0x48] sm:$0xff]
    %v1050 = vld [vmem:[#allocation4 + $0x50] sm:$0xff]
    %v1051 = vld [vmem:[#allocation4 + $0x58] sm:$0xff]
    %v1052 = vld [vmem:[#allocation4 + $0x60] sm:$0xff]
    %v1053 = vld [vmem:[#allocation4 + $0x68] sm:$0xff]
    %v1054 = vld [vmem:[#allocation4 + $0x70] sm:$0xff]
    %v1055 = vld [vmem:[#allocation4 + $0x78] sm:$0xff]
    %v1056 = vmin.f32 %v1024, %v1040
    %v1057 = vmin.f32 %v1025, %v1041
    %v1058 = vmin.f32 %v1026, %v1042
    %v1059 = vmin.f32 %v1027, %v1043
    %v1060 = vmin.f32 %v1028, %v1044
    %v1061 = vmin.f32 %v1029, %v1045
    %v1062 = vmin.f32 %v1030, %v1046
    %v1063 = vmin.f32 %v1031, %v1047
    %v1064 = vmin.f32 %v1032, %v1048
    %v1065 = vmin.f32 %v1033, %v1049
    %v1066 = vmin.f32 %v1034, %v1050
    %v1067 = vmin.f32 %v1035, %v1051
    %v1068 = vmin.f32 %v1036, %v1052
    %v1069 = vmin.f32 %v1037, %v1053
    %v1070 = vmin.f32 %v1038, %v1054
    %v1071 = vmin.f32 %v1039, %v1055
    %v1072 = vld [vmem:[#allocation2] sm:$0xff]
    %v1073 = vld [vmem:[#allocation2 + $0x8] sm:$0xff]
    %v1074 = vld [vmem:[#allocation2 + $0x10] sm:$0xff]
    %v1075 = vld [vmem:[#allocation2 + $0x18] sm:$0xff]
    %v1076 = vld [vmem:[#allocation2 + $0x20] sm:$0xff]
    %v1077 = vld [vmem:[#allocation2 + $0x28] sm:$0xff]
    %v1078 = vld [vmem:[#allocation2 + $0x30] sm:$0xff]
    %v1079 = vld [vmem:[#allocation2 + $0x38] sm:$0xff]
    %v1080 = vld [vmem:[#allocation2 + $0x40] sm:$0xff]
    %v1081 = vld [vmem:[#allocation2 + $0x48] sm:$0xff]
    %v1082 = vld [vmem:[#allocation2 + $0x50] sm:$0xff]
    %v1083 = vld [vmem:[#allocation2 + $0x58] sm:$0xff]
    %v1084 = vld [vmem:[#allocation2 + $0x60] sm:$0xff]
    %v1085 = vld [vmem:[#allocation2 + $0x68] sm:$0xff]
    %v1086 = vld [vmem:[#allocation2 + $0x70] sm:$0xff]
    %v1087 = vld [vmem:[#allocation2 + $0x78] sm:$0xff]
    %v1088 = vsub.f32 %v1072, %v1056
    %v1089 = vsub.f32 %v1073, %v1057
    %v1090 = vsub.f32 %v1074, %v1058
    %v1091 = vsub.f32 %v1075, %v1059
    %v1092 = vsub.f32 %v1076, %v1060
    %v1093 = vsub.f32 %v1077, %v1061
    %v1094 = vsub.f32 %v1078, %v1062
    %v1095 = vsub.f32 %v1079, %v1063
    %v1096 = vsub.f32 %v1080, %v1064
    %v1097 = vsub.f32 %v1081, %v1065
    %v1098 = vsub.f32 %v1082, %v1066
    %v1099 = vsub.f32 %v1083, %v1067
    %v1100 = vsub.f32 %v1084, %v1068
    %v1101 = vsub.f32 %v1085, %v1069
    %v1102 = vsub.f32 %v1086, %v1070
    %v1103 = vsub.f32 %v1087, %v1071
    %v1104 = vadd.f32 %v1088, 1.0
    %v1105 = vadd.f32 %v1089, 1.0
    %v1106 = vadd.f32 %v1090, 1.0
    %v1107 = vadd.f32 %v1091, 1.0
    %v1108 = vadd.f32 %v1092, 1.0
    %v1109 = vadd.f32 %v1093, 1.0
    %v1110 = vadd.f32 %v1094, 1.0
    %v1111 = vadd.f32 %v1095, 1.0
    %v1112 = vadd.f32 %v1096, 1.0
    %v1113 = vadd.f32 %v1097, 1.0
    %v1114 = vadd.f32 %v1098, 1.0
    %v1115 = vadd.f32 %v1099, 1.0
    %v1116 = vadd.f32 %v1100, 1.0
    %v1117 = vadd.f32 %v1101, 1.0
    %v1118 = vadd.f32 %v1102, 1.0
    %v1119 = vadd.f32 %v1103, 1.0
    %v1120 = vmax.f32 %v1104, 0.0
    %v1121 = vmax.f32 %v1105, 0.0
    %v1122 = vmax.f32 %v1106, 0.0
    %v1123 = vmax.f32 %v1107, 0.0
    %v1124 = vmax.f32 %v1108, 0.0
    %v1125 = vmax.f32 %v1109, 0.0
    %v1126 = vmax.f32 %v1110, 0.0
    %v1127 = vmax.f32 %v1111, 0.0
    %v1128 = vmax.f32 %v1112, 0.0
    %v1129 = vmax.f32 %v1113, 0.0
    %v1130 = vmax.f32 %v1114, 0.0
    %v1131 = vmax.f32 %v1115, 0.0
    %v1132 = vmax.f32 %v1116, 0.0
    %v1133 = vmax.f32 %v1117, 0.0
    %v1134 = vmax.f32 %v1118, 0.0
    %v1135 = vmax.f32 %v1119, 0.0
    %1136 = vst.msk [vmem:[%s6] sm:$0xff] %vm828, %v1120
    %1137 = vst.msk [vmem:[%s6 + $0x8] sm:$0xff] %vm828, %v1121
    %1138 = vst.msk [vmem:[%s6 + $0x10] sm:$0xff] %vm828, %v1122
    %1139 = vst.msk [vmem:[%s6 + $0x18] sm:$0xff] %vm828, %v1123
    %1140 = vst.msk [vmem:[%s6 + $0x20] sm:$0xff] %vm828, %v1124
    %1141 = vst.msk [vmem:[%s6 + $0x28] sm:$0xff] %vm828, %v1125
    %1142 = vst.msk [vmem:[%s6 + $0x30] sm:$0xff] %vm828, %v1126
    %1143 = vst.msk [vmem:[%s6 + $0x38] sm:$0xff] %vm828, %v1127
    %1144 = vst.msk [vmem:[%s6 + $0x40] sm:$0xff] %vm828, %v1128
    %1145 = vst.msk [vmem:[%s6 + $0x48] sm:$0xff] %vm828, %v1129
    %1146 = vst.msk [vmem:[%s6 + $0x50] sm:$0xff] %vm828, %v1130
    %1147 = vst.msk [vmem:[%s6 + $0x58] sm:$0xff] %vm828, %v1131
    %1148 = vst.msk [vmem:[%s6 + $0x60] sm:$0xff] %vm828, %v1132
    %1149 = vst.msk [vmem:[%s6 + $0x68] sm:$0xff] %vm828, %v1133
    %1150 = vst.msk [vmem:[%s6 + $0x70] sm:$0xff] %vm828, %v1134
    %1151 = vst.msk [vmem:[%s6 + $0x78] sm:$0xff] %vm828, %v1135
  $region33: #{tpu_custom_call.1} parent=0 // pred_fallthru
    _
  // Predicated region
  $region34: #{tpu_custom_call.1} parent=0 // pred_check
    _
  $region35: #{tpu_custom_call.1} parent=0 // pred_check_branch
    %1153 = sbr.rel (0) target = $region37
  $region36: #{tpu_custom_call.1} parent=0 // pred_region
    _
  $region37: #{tpu_custom_call.1} parent=0 // pred_fallthru
    _
  // Predicated region
  $region38: #{tpu_custom_call.1} parent=0 // pred_check
    _
  $region39: #{tpu_custom_call.1} parent=0 // pred_check_branch
    %1155 = sbr.rel (0) target = $region41
  $region40: #{tpu_custom_call.1} parent=0 // pred_region
    _
  $region41: #{tpu_custom_call.1} parent=0 // pred_fallthru
    _

</llo_original>
